<compile_context>
chip_gen: v7x
topology: tpu7x:2x2x1
jax: 0.10.0
libtpu: 0.0.40
codegen_flags: <defaults>
</compile_context>

<pallas_src>
import math

import jax
import jax.numpy as jnp
from jax.experimental import pallas as pl
from jax.experimental.pallas import tpu as pltpu

LANE = 128  # TPU lane width; the packed GRU gate block is padded once to this


def _round_up(n, m):
    return ((n + m - 1) // m) * m


def _sigmoid(v):
    # exp + approx reciprocal both go to the EUP slot (free vs the busy VALU).
    return pl.reciprocal(1.0 + jnp.exp(-v), approx=True)


def _ais_generate_kernel(x_ref, h_ref,
                         w1_ref, b1_ref, w2_ref, b2_ref, w3_ref, b3_ref,
                         wih_ref, bih_ref, whh_ref, bhh_ref,
                         o_ref):
    f32, bf16 = jnp.float32, jnp.bfloat16
    s = o_ref.shape[1]                                  # state_dim (unpadded)

    x = x_ref[...].astype(bf16)                         # (bt, in_dim)
    h = h_ref[...].astype(f32)                          # (bt, s)

    h1 = jnp.maximum(
        jnp.dot(x, w1_ref[...], preferred_element_type=f32) + b1_ref[...], 0.0)
    h2 = jnp.maximum(
        jnp.dot(h1.astype(bf16), w2_ref[...], preferred_element_type=f32)
        + b2_ref[...], 0.0)
    h3 = jnp.maximum(
        jnp.dot(h2.astype(bf16), w3_ref[...], preferred_element_type=f32)
        + b3_ref[...], 0.0)

    # GRUCell: gates packed [r | z | n | zero-pad] in one 128-wide lane tile.
    gi = jnp.dot(h3.astype(bf16), wih_ref[...],
                 preferred_element_type=f32) + bih_ref[...]
    gh = jnp.dot(h.astype(bf16), whh_ref[...],
                 preferred_element_type=f32) + bhh_ref[...]

    r = _sigmoid(gi[:, 0:s] + gh[:, 0:s])
    z = _sigmoid(gi[:, s:2 * s] + gh[:, s:2 * s])
    n = jnp.tanh(gi[:, 2 * s:3 * s] + r * gh[:, 2 * s:3 * s])
    h_new = (1.0 - z) * n + z * h
    o_ref[...] = h_new.astype(o_ref.dtype)


def ais_generate_2(x, h, kparams, *, batch_tile=512):
    """x: (B, obs_dim + num_actions) f32; h: (B, state_dim) f32.
    kparams: output of prepare_params().  Returns new hidden (B, state_dim)."""
    B, in_dim = x.shape
    state_dim = h.shape[1]

    # Batch tile: multiple of 16 (full bf16 sublane packing), as large as
    # batch_tile allows, but keep >=2 grid steps when B is big enough so both
    # v7x TensorCores get work.
    bt = min(batch_tile, _round_up(pl.cdiv(B, 2), 16))
    bt = max(16, min(bt, _round_up(B, 16)))
    Bp = _round_up(B, bt)
    grid = (Bp // bt,)

    # Row-only padding, and only when B is not already a tile multiple.
    if Bp != B:
        x_in = jnp.pad(x, ((0, Bp - B), (0, 0)))
        h_in = jnp.pad(h, ((0, Bp - B), (0, 0)))
    else:
        x_in, h_in = x, h

    (w1, b1, w2, b2, w3, b3, wih, bih, whh, bhh) = kparams
    gpad = wih.shape[1]                                 # padded gate width (128)

    def resident(arr):
        # Full-array block with constant index_map -> stays resident in VMEM.
        return pl.BlockSpec(arr.shape, lambda i: (0, 0))

    param_bytes = sum(int(a.size) * a.dtype.itemsize for a in kparams)
    cost = pl.CostEstimate(
        flops=2 * Bp * (in_dim * 64 + 64 * 128 + 128 * 64
                        + 64 * gpad + state_dim * gpad),
        transcendentals=5 * Bp * state_dim,
        bytes_accessed=4 * Bp * (in_dim + 2 * state_dim) + param_bytes,
    )

    out = pl.pallas_call(
        _ais_generate_kernel,
        out_shape=jax.ShapeDtypeStruct((Bp, state_dim), jnp.float32),
        grid_spec=pltpu.PrefetchScalarGridSpec(
            num_scalar_prefetch=0,
            grid=grid,
            in_specs=[
                pl.BlockSpec((bt, in_dim), lambda i: (i, 0)),
                pl.BlockSpec((bt, state_dim), lambda i: (i, 0)),
                resident(w1), resident(b1),
                resident(w2), resident(b2),
                resident(w3), resident(b3),
                resident(wih), resident(bih),
                resident(whh), resident(bhh),
            ],
            out_specs=pl.BlockSpec((bt, state_dim), lambda i: (i, 0)),
        ),
        compiler_params=pltpu.CompilerParams(
            dimension_semantics=("parallel",)),
        cost_estimate=cost,
    )(x_in, h_in, w1, b1, w2, b2, w3, b3, wih, bih, whh, bhh)

    return out if Bp == B else out[:B]


def init_params(key, state_dim, obs_dim, num_actions):
    """Logical (unpadded, f32) params, pre-transposed to (in, out).
    GRU gate columns ordered [r | z | n] like torch.nn.GRUCell."""
    in_dim = obs_dim + num_actions
    specs = [
        ("w1", (in_dim, 64), in_dim), ("b1", (64,), in_dim),
        ("w2", (64, 128), 64), ("b2", (128,), 64),
        ("w3", (128, 64), 128), ("b3", (64,), 128),
        ("wih", (64, 3 * state_dim), state_dim),
        ("bih", (3 * state_dim,), state_dim),
        ("whh", (state_dim, 3 * state_dim), state_dim),
        ("bhh", (3 * state_dim,), state_dim),
    ]
    params = {}
    for name, shape, fan in specs:
        key, sub = jax.random.split(key)
        bound = 1.0 / math.sqrt(fan)
        params[name] = jax.random.uniform(sub, shape, jnp.float32, -bound, bound)
    return params


def prepare_params(params, state_dim):
    """Cast matmul weights to bf16 (biases stay f32).  The packed GRU gate
    block [r|z|n] (3*state_dim cols) is zero-padded once to a single 128-wide
    lane tile -- exact for the real lanes; the MLP weights keep natural sizes."""
    bf16, f32 = jnp.bfloat16, jnp.float32
    g = 3 * state_dim
    gpad = _round_up(g, LANE)

    wih = jnp.pad(params["wih"], ((0, 0), (0, gpad - g))).astype(bf16)
    whh = jnp.pad(params["whh"], ((0, 0), (0, gpad - g))).astype(bf16)
    bih = jnp.pad(params["bih"], (0, gpad - g))[None, :].astype(f32)
    bhh = jnp.pad(params["bhh"], (0, gpad - g))[None, :].astype(f32)

    return (
        params["w1"].astype(bf16), params["b1"][None, :].astype(f32),
        params["w2"].astype(bf16), params["b2"][None, :].astype(f32),
        params["w3"].astype(bf16), params["b3"][None, :].astype(f32),
        wih, bih, whh, bhh,
    )


def _reference(x, h, p):
    a = jnp.maximum(x @ p["w1"] + p["b1"], 0.0)
    a = jnp.maximum(a @ p["w2"] + p["b2"], 0.0)
    a = jnp.maximum(a @ p["w3"] + p["b3"], 0.0)
    gi = a @ p["wih"] + p["bih"]
    gh = h @ p["whh"] + p["bhh"]
    s = h.shape[1]
    r = jax.nn.sigmoid(gi[:, :s] + gh[:, :s])
    z = jax.nn.sigmoid(gi[:, s:2 * s] + gh[:, s:2 * s])
    n = jnp.tanh(gi[:, 2 * s:] + r * gh[:, 2 * s:])
    return (1.0 - z) * n + z * h


if __name__ == "__main__":
    state_dim, obs_dim, num_actions = 16, 12, 4
    batch = 16

    key = jax.random.PRNGKey(0)
    key, kx, kh = jax.random.split(key, 3)
    x = jax.random.normal(kx, (batch, obs_dim + num_actions), jnp.float32)
    h = jax.random.normal(kh, (batch, state_dim), jnp.float32)

    params = init_params(key, state_dim, obs_dim, num_actions)
    kparams = prepare_params(params, state_dim)

    out = jax.block_until_ready(ais_generate_2(x, h, kparams))

    ref = _reference(x, h, params)
    assert out.shape == (batch, state_dim)
    # bf16 MXU operands (f32 accumulation) + approx reciprocal -> loosened tol.
    assert jnp.allclose(out, ref, atol=2e-2, rtol=2e-2), "mismatch vs reference"
    print("KERNEL_OK")
</pallas_src>

<mosaic_0001>
module attributes {stable_mosaic.version = 11 : i64} {
  func.func @_ais_generate_kernel(%arg0: i32, %arg1: memref<16x16xf32, #tpu.memory_space<vmem>>, %arg2: memref<16x16xf32, #tpu.memory_space<vmem>>, %arg3: memref<16x64xbf16, #tpu.memory_space<vmem>>, %arg4: memref<1x64xf32, #tpu.memory_space<vmem>>, %arg5: memref<64x128xbf16, #tpu.memory_space<vmem>>, %arg6: memref<1x128xf32, #tpu.memory_space<vmem>>, %arg7: memref<128x64xbf16, #tpu.memory_space<vmem>>, %arg8: memref<1x64xf32, #tpu.memory_space<vmem>>, %arg9: memref<64x128xbf16, #tpu.memory_space<vmem>>, %arg10: memref<1x128xf32, #tpu.memory_space<vmem>>, %arg11: memref<16x128xbf16, #tpu.memory_space<vmem>>, %arg12: memref<1x128xf32, #tpu.memory_space<vmem>>, %arg13: memref<16x16xf32, #tpu.memory_space<vmem>>) attributes {dimension_semantics = [#tpu.dimension_semantics<parallel>], iteration_bounds = array<i64: 1>, scalar_prefetch = 0 : i64, scratch_operands = 0 : i64, tpu.core_type = #tpu.core_type<tc>, window_params = [{transform_indices = @transform_0, window_bounds = array<i64: 16, 16>}, {transform_indices = @transform_1, window_bounds = array<i64: 16, 16>}, {pipeline_mode = #tpu.pipeline_mode<synchronous>, transform_indices = @transform_2, window_bounds = array<i64: 16, 64>}, {pipeline_mode = #tpu.pipeline_mode<synchronous>, transform_indices = @transform_3, window_bounds = array<i64: 1, 64>}, {pipeline_mode = #tpu.pipeline_mode<synchronous>, transform_indices = @transform_4, window_bounds = array<i64: 64, 128>}, {pipeline_mode = #tpu.pipeline_mode<synchronous>, transform_indices = @transform_5, window_bounds = array<i64: 1, 128>}, {pipeline_mode = #tpu.pipeline_mode<synchronous>, transform_indices = @transform_6, window_bounds = array<i64: 128, 64>}, {pipeline_mode = #tpu.pipeline_mode<synchronous>, transform_indices = @transform_7, window_bounds = array<i64: 1, 64>}, {pipeline_mode = #tpu.pipeline_mode<synchronous>, transform_indices = @transform_8, window_bounds = array<i64: 64, 128>}, {pipeline_mode = #tpu.pipeline_mode<synchronous>, transform_indices = @transform_9, window_bounds = array<i64: 1, 128>}, {pipeline_mode = #tpu.pipeline_mode<synchronous>, transform_indices = @transform_10, window_bounds = array<i64: 16, 128>}, {pipeline_mode = #tpu.pipeline_mode<synchronous>, transform_indices = @transform_11, window_bounds = array<i64: 1, 128>}, {transform_indices = @transform_12, window_bounds = array<i64: 16, 16>}]} {
    %c0 = arith.constant 0 : index
    %c0_0 = arith.constant 0 : index
    %0 = vector.load %arg1[%c0, %c0_0] : memref<16x16xf32, #tpu.memory_space<vmem>>, vector<16x16xf32>
    %1 = arith.truncf %0 : vector<16x16xf32> to vector<16x16xbf16>
    %c0_1 = arith.constant 0 : index
    %c0_2 = arith.constant 0 : index
    %2 = vector.load %arg2[%c0_1, %c0_2] : memref<16x16xf32, #tpu.memory_space<vmem>>, vector<16x16xf32>
    %c0_3 = arith.constant 0 : index
    %c0_4 = arith.constant 0 : index
    %3 = vector.load %arg3[%c0_3, %c0_4] : memref<16x64xbf16, #tpu.memory_space<vmem>>, vector<16x64xbf16>
    %cst = arith.constant dense<0.000000e+00> : vector<16x64xf32>
    %4 = tpu.matmul %1, %3, %cst {dimension_numbers = #tpu.dot_dimension_numbers<[1], [0], [0], [1], [0, 0, 1, 1], [], []>} : vector<16x16xbf16>, vector<16x64xbf16>, vector<16x64xf32> -> vector<16x64xf32>
    %c0_5 = arith.constant 0 : index
    %c0_6 = arith.constant 0 : index
    %5 = vector.load %arg4[%c0_5, %c0_6] : memref<1x64xf32, #tpu.memory_space<vmem>>, vector<1x64xf32>
    %6 = vector.broadcast %5 : vector<1x64xf32> to vector<16x64xf32>
    %7 = arith.addf %4, %6 : vector<16x64xf32>
    %cst_7 = arith.constant 0.000000e+00 : f32
    %8 = vector.broadcast %cst_7 : f32 to vector<16x64xf32>
    %9 = arith.maximumf %7, %8 : vector<16x64xf32>
    %10 = arith.truncf %9 : vector<16x64xf32> to vector<16x64xbf16>
    %c0_8 = arith.constant 0 : index
    %c0_9 = arith.constant 0 : index
    %11 = vector.load %arg5[%c0_8, %c0_9] : memref<64x128xbf16, #tpu.memory_space<vmem>>, vector<64x128xbf16>
    %cst_10 = arith.constant dense<0.000000e+00> : vector<16x128xf32>
    %12 = tpu.matmul %10, %11, %cst_10 {dimension_numbers = #tpu.dot_dimension_numbers<[1], [0], [0], [1], [0, 0, 1, 1], [], []>} : vector<16x64xbf16>, vector<64x128xbf16>, vector<16x128xf32> -> vector<16x128xf32>
    %c0_11 = arith.constant 0 : index
    %c0_12 = arith.constant 0 : index
    %13 = vector.load %arg6[%c0_11, %c0_12] : memref<1x128xf32, #tpu.memory_space<vmem>>, vector<1x128xf32>
    %14 = vector.broadcast %13 : vector<1x128xf32> to vector<16x128xf32>
    %15 = arith.addf %12, %14 : vector<16x128xf32>
    %cst_13 = arith.constant 0.000000e+00 : f32
    %16 = vector.broadcast %cst_13 : f32 to vector<16x128xf32>
    %17 = arith.maximumf %15, %16 : vector<16x128xf32>
    %18 = arith.truncf %17 : vector<16x128xf32> to vector<16x128xbf16>
    %c0_14 = arith.constant 0 : index
    %c0_15 = arith.constant 0 : index
    %19 = vector.load %arg7[%c0_14, %c0_15] : memref<128x64xbf16, #tpu.memory_space<vmem>>, vector<128x64xbf16>
    %cst_16 = arith.constant dense<0.000000e+00> : vector<16x64xf32>
    %20 = tpu.matmul %18, %19, %cst_16 {dimension_numbers = #tpu.dot_dimension_numbers<[1], [0], [0], [1], [0, 0, 1, 1], [], []>} : vector<16x128xbf16>, vector<128x64xbf16>, vector<16x64xf32> -> vector<16x64xf32>
    %c0_17 = arith.constant 0 : index
    %c0_18 = arith.constant 0 : index
    %21 = vector.load %arg8[%c0_17, %c0_18] : memref<1x64xf32, #tpu.memory_space<vmem>>, vector<1x64xf32>
    %22 = vector.broadcast %21 : vector<1x64xf32> to vector<16x64xf32>
    %23 = arith.addf %20, %22 : vector<16x64xf32>
    %cst_19 = arith.constant 0.000000e+00 : f32
    %24 = vector.broadcast %cst_19 : f32 to vector<16x64xf32>
    %25 = arith.maximumf %23, %24 : vector<16x64xf32>
    %26 = arith.truncf %25 : vector<16x64xf32> to vector<16x64xbf16>
    %c0_20 = arith.constant 0 : index
    %c0_21 = arith.constant 0 : index
    %27 = vector.load %arg9[%c0_20, %c0_21] : memref<64x128xbf16, #tpu.memory_space<vmem>>, vector<64x128xbf16>
    %cst_22 = arith.constant dense<0.000000e+00> : vector<16x128xf32>
    %28 = tpu.matmul %26, %27, %cst_22 {dimension_numbers = #tpu.dot_dimension_numbers<[1], [0], [0], [1], [0, 0, 1, 1], [], []>} : vector<16x64xbf16>, vector<64x128xbf16>, vector<16x128xf32> -> vector<16x128xf32>
    %c0_23 = arith.constant 0 : index
    %c0_24 = arith.constant 0 : index
    %29 = vector.load %arg10[%c0_23, %c0_24] : memref<1x128xf32, #tpu.memory_space<vmem>>, vector<1x128xf32>
    %30 = vector.broadcast %29 : vector<1x128xf32> to vector<16x128xf32>
    %31 = arith.addf %28, %30 : vector<16x128xf32>
    %32 = arith.truncf %2 : vector<16x16xf32> to vector<16x16xbf16>
    %c0_25 = arith.constant 0 : index
    %c0_26 = arith.constant 0 : index
    %33 = vector.load %arg11[%c0_25, %c0_26] : memref<16x128xbf16, #tpu.memory_space<vmem>>, vector<16x128xbf16>
    %cst_27 = arith.constant dense<0.000000e+00> : vector<16x128xf32>
    %34 = tpu.matmul %32, %33, %cst_27 {dimension_numbers = #tpu.dot_dimension_numbers<[1], [0], [0], [1], [0, 0, 1, 1], [], []>} : vector<16x16xbf16>, vector<16x128xbf16>, vector<16x128xf32> -> vector<16x128xf32>
    %c0_28 = arith.constant 0 : index
    %c0_29 = arith.constant 0 : index
    %35 = vector.load %arg12[%c0_28, %c0_29] : memref<1x128xf32, #tpu.memory_space<vmem>>, vector<1x128xf32>
    %36 = vector.broadcast %35 : vector<1x128xf32> to vector<16x128xf32>
    %37 = arith.addf %34, %36 : vector<16x128xf32>
    %38 = vector.extract_strided_slice %31 {offsets = [0, 0], sizes = [16, 16], strides = [1, 1]} : vector<16x128xf32> to vector<16x16xf32>
    %39 = vector.extract_strided_slice %37 {offsets = [0, 0], sizes = [16, 16], strides = [1, 1]} : vector<16x128xf32> to vector<16x16xf32>
    %40 = arith.addf %38, %39 : vector<16x16xf32>
    %cst_30 = arith.constant 0.000000e+00 : f32
    %41 = vector.broadcast %cst_30 : f32 to vector<16x16xf32>
    %42 = arith.subf %41, %40 : vector<16x16xf32>
    %43 = math.exp %42 : vector<16x16xf32>
    %cst_31 = arith.constant 1.000000e+00 : f32
    %44 = vector.broadcast %cst_31 : f32 to vector<16x16xf32>
    %45 = arith.addf %44, %43 : vector<16x16xf32>
    %46 = tpu.reciprocal %45 {approx = true} : vector<16x16xf32> -> vector<16x16xf32>
    %47 = vector.extract_strided_slice %31 {offsets = [0, 16], sizes = [16, 16], strides = [1, 1]} : vector<16x128xf32> to vector<16x16xf32>
    %48 = vector.extract_strided_slice %37 {offsets = [0, 16], sizes = [16, 16], strides = [1, 1]} : vector<16x128xf32> to vector<16x16xf32>
    %49 = arith.addf %47, %48 : vector<16x16xf32>
    %cst_32 = arith.constant 0.000000e+00 : f32
    %50 = vector.broadcast %cst_32 : f32 to vector<16x16xf32>
    %51 = arith.subf %50, %49 : vector<16x16xf32>
    %52 = math.exp %51 : vector<16x16xf32>
    %cst_33 = arith.constant 1.000000e+00 : f32
    %53 = vector.broadcast %cst_33 : f32 to vector<16x16xf32>
    %54 = arith.addf %53, %52 : vector<16x16xf32>
    %55 = tpu.reciprocal %54 {approx = true} : vector<16x16xf32> -> vector<16x16xf32>
    %56 = vector.extract_strided_slice %31 {offsets = [0, 32], sizes = [16, 16], strides = [1, 1]} : vector<16x128xf32> to vector<16x16xf32>
    %57 = vector.extract_strided_slice %37 {offsets = [0, 32], sizes = [16, 16], strides = [1, 1]} : vector<16x128xf32> to vector<16x16xf32>
    %58 = arith.mulf %46, %57 : vector<16x16xf32>
    %59 = arith.addf %56, %58 : vector<16x16xf32>
    %60 = math.tanh %59 : vector<16x16xf32>
    %cst_34 = arith.constant 1.000000e+00 : f32
    %61 = vector.broadcast %cst_34 : f32 to vector<16x16xf32>
    %62 = arith.subf %61, %55 : vector<16x16xf32>
    %63 = arith.mulf %62, %60 : vector<16x16xf32>
    %64 = arith.mulf %55, %2 : vector<16x16xf32>
    %65 = arith.addf %63, %64 : vector<16x16xf32>
    %c0_35 = arith.constant 0 : index
    %c0_36 = arith.constant 0 : index
    %66 = vector.load %arg13[%c0_35, %c0_36] : memref<16x16xf32, #tpu.memory_space<vmem>>, vector<16x16xf32>
    tpu.vector_store %arg13[%c0_35, %c0_36], %65 {strides = array<i32>} : memref<16x16xf32, #tpu.memory_space<vmem>>, vector<16x16xf32>,
    return
  }
  func.func @transform_0(%arg0: i32) -> (i32, i32) {
    %c0_i32 = arith.constant 0 : i32
    %c0_i32_0 = arith.constant 0 : i32
    return %arg0, %c0_i32 : i32, i32
  }
  func.func @transform_1(%arg0: i32) -> (i32, i32) {
    %c0_i32 = arith.constant 0 : i32
    %c0_i32_0 = arith.constant 0 : i32
    return %arg0, %c0_i32 : i32, i32
  }
  func.func @transform_2(%arg0: i32) -> (i32, i32) {
    %c0_i32 = arith.constant 0 : i32
    %c0_i32_0 = arith.constant 0 : i32
    %c0_i32_1 = arith.constant 0 : i32
    return %c0_i32, %c0_i32_0 : i32, i32
  }
  func.func @transform_3(%arg0: i32) -> (i32, i32) {
    %c0_i32 = arith.constant 0 : i32
    %c0_i32_0 = arith.constant 0 : i32
    %c0_i32_1 = arith.constant 0 : i32
    return %c0_i32, %c0_i32_0 : i32, i32
  }
  func.func @transform_4(%arg0: i32) -> (i32, i32) {
    %c0_i32 = arith.constant 0 : i32
    %c0_i32_0 = arith.constant 0 : i32
    %c0_i32_1 = arith.constant 0 : i32
    return %c0_i32, %c0_i32_0 : i32, i32
  }
  func.func @transform_5(%arg0: i32) -> (i32, i32) {
    %c0_i32 = arith.constant 0 : i32
    %c0_i32_0 = arith.constant 0 : i32
    %c0_i32_1 = arith.constant 0 : i32
    return %c0_i32, %c0_i32_0 : i32, i32
  }
  func.func @transform_6(%arg0: i32) -> (i32, i32) {
    %c0_i32 = arith.constant 0 : i32
    %c0_i32_0 = arith.constant 0 : i32
    %c0_i32_1 = arith.constant 0 : i32
    return %c0_i32, %c0_i32_0 : i32, i32
  }
  func.func @transform_7(%arg0: i32) -> (i32, i32) {
    %c0_i32 = arith.constant 0 : i32
    %c0_i32_0 = arith.constant 0 : i32
    %c0_i32_1 = arith.constant 0 : i32
    return %c0_i32, %c0_i32_0 : i32, i32
  }
  func.func @transform_8(%arg0: i32) -> (i32, i32) {
    %c0_i32 = arith.constant 0 : i32
    %c0_i32_0 = arith.constant 0 : i32
    %c0_i32_1 = arith.constant 0 : i32
    return %c0_i32, %c0_i32_0 : i32, i32
  }
  func.func @transform_9(%arg0: i32) -> (i32, i32) {
    %c0_i32 = arith.constant 0 : i32
    %c0_i32_0 = arith.constant 0 : i32
    %c0_i32_1 = arith.constant 0 : i32
    return %c0_i32, %c0_i32_0 : i32, i32
  }
  func.func @transform_10(%arg0: i32) -> (i32, i32) {
    %c0_i32 = arith.constant 0 : i32
    %c0_i32_0 = arith.constant 0 : i32
    %c0_i32_1 = arith.constant 0 : i32
    return %c0_i32, %c0_i32_0 : i32, i32
  }
  func.func @transform_11(%arg0: i32) -> (i32, i32) {
    %c0_i32 = arith.constant 0 : i32
    %c0_i32_0 = arith.constant 0 : i32
    %c0_i32_1 = arith.constant 0 : i32
    return %c0_i32, %c0_i32_0 : i32, i32
  }
  func.func @transform_12(%arg0: i32) -> (i32, i32) {
    %c0_i32 = arith.constant 0 : i32
    %c0_i32_0 = arith.constant 0 : i32
    return %arg0, %c0_i32 : i32, i32
  }
}

</mosaic_0001>

<llo_original>
// kernel: tpu_custom_call.1
$region0: #{tpu_custom_call.1}
  #allocation0 [shape = 'u32[]', space=smem, size = 0x4, offset = 0x4, fixed_abs, tag = 'smem constant byte address 0x4 - core index']
  #allocation1 [shape = 'u32[144,128]{1,0:T(1,128)}', space=vmem, size = 0x12000, scoped, tag = 'internal scratch']
  %s0 = inlined_call_operand.vmem [shape: f32[16,16], index: 0, kind: input, shape index: {}]
  %s1 = inlined_call_operand.vmem [shape: f32[16,16], index: 1, kind: input, shape index: {}]
  %s2 = inlined_call_operand.hbm [shape: bf16[16,64], index: 2, kind: input, shape index: {}]
  %s3 = inlined_call_operand.vmem [shape: f32[1,64], index: 3, kind: input, shape index: {}]
  %s4 = inlined_call_operand.vmem [shape: bf16[64,128], index: 4, kind: input, shape index: {}]
  %s5 = inlined_call_operand.vmem [shape: f32[1,128], index: 5, kind: input, shape index: {}]
  %s6 = inlined_call_operand.vmem [shape: bf16[128,64], index: 6, kind: input, shape index: {}]
  %s7 = inlined_call_operand.vmem [shape: f32[1,64], index: 7, kind: input, shape index: {}]
  %s8 = inlined_call_operand.vmem [shape: bf16[64,128], index: 8, kind: input, shape index: {}]
  %s9 = inlined_call_operand.vmem [shape: f32[1,128], index: 9, kind: input, shape index: {}]
  %s10 = inlined_call_operand.vmem [shape: bf16[16,128], index: 10, kind: input, shape index: {}]
  %s11 = inlined_call_operand.vmem [shape: f32[1,128], index: 11, kind: input, shape index: {}]
  %s12 = inlined_call_operand.hbm [shape: f32[16,16], index: 12, kind: output, shape index: {}]
  %s13 = sld [smem:[#allocation0]]
  $region62: #{tpu_custom_call.1} parent=0
    _
  %s15 = ssub.s32 1, %s13
  %s16 = scalar_select 0, %s15, %s13
  $region1: #{tpu_custom_call.1} parent=0
    #allocation2 [shape = 'u8[4096]{0}', space=vmem, size = 0x1000, scoped, tag = 'input window, operand 2, single buffered']
    #allocation3 [shape = 's32[1]{0}', space=sflag, size = 0x4, scoped, tag = 'scoped memory for tpu_custom_call.1']
    #allocation4 [shape = 's32[1]{0}', space=sflag, size = 0x4, scoped, tag = 'scoped memory for tpu_custom_call.1']
    #allocation5 [shape = 'u8[8192]{0}', space=vmem, size = 0x2000, scoped, tag = 'output window, operand 0, single buffered']
    %17 = vsyncpa [#allocation3], 0
    %18 = vsyncpa [#allocation4], 0
    // Predicated region
    $region2: #{tpu_custom_call.1} parent=1 // pred_check
      _
    $region3: #{tpu_custom_call.1} parent=1 // pred_check_branch
      %20 = sbr.rel (0) target = $region5
    $region4: #{tpu_custom_call.1} parent=1 // pred_region
      _
    $region5: #{tpu_custom_call.1} parent=1 // pred_fallthru
      _
    // Predicated region
    $region6: #{tpu_custom_call.1} parent=1 // pred_check
      _
    $region7: #{tpu_custom_call.1} parent=1 // pred_check_branch
      %22 = sbr.rel (0) target = $region9
    $region8: #{tpu_custom_call.1} parent=1 // pred_region
      _
    $region9: #{tpu_custom_call.1} parent=1 // pred_fallthru
      _
    // Predicated region
    $region10: #{tpu_custom_call.1} parent=1 // pred_check
      _
    $region11: #{tpu_custom_call.1} parent=1 // pred_check_branch
      %24 = sbr.rel (0) target = $region13
    $region12: #{tpu_custom_call.1} parent=1 // pred_region
      %s26 = ssub.s32 128, 128
      %27 = vsyncadd [#allocation3], %s26
      %s28 = sshll.u32 [#allocation2], 4
      %s29 = int_to_ptr.vmem [resolvable:$true] %s28
      %34 = dma.hbm_to_vmem [thread:$0]  %s2, 128, %s29, [#allocation3], 64, 64, 4
    $region13: #{tpu_custom_call.1} parent=1 // pred_fallthru
      _
    // Predicated region
    $region14: #{tpu_custom_call.1} parent=1 // pred_check
      _
    $region15: #{tpu_custom_call.1} parent=1 // pred_check_branch
      %36 = sbr.rel (0) target = $region17
    $region16: #{tpu_custom_call.1} parent=1 // pred_region
      _
    $region17: #{tpu_custom_call.1} parent=1 // pred_fallthru
      _
    // Predicated region
    $region18: #{tpu_custom_call.1} parent=1 // pred_check
      _
    $region19: #{tpu_custom_call.1} parent=1 // pred_check_branch
      %38 = sbr.rel (0) target = $region21
    $region20: #{tpu_custom_call.1} parent=1 // pred_region
      _
    $region21: #{tpu_custom_call.1} parent=1 // pred_fallthru
      _
    // Predicated region
    $region22: #{tpu_custom_call.1} parent=1 // pred_check
      _
    $region23: #{tpu_custom_call.1} parent=1 // pred_check_branch
      %40 = sbr.rel (0) target = $region25
    $region24: #{tpu_custom_call.1} parent=1 // pred_region
      _
    $region25: #{tpu_custom_call.1} parent=1 // pred_fallthru
      _
    // Predicated region
    $region26: #{tpu_custom_call.1} parent=1 // pred_check
      _
    $region27: #{tpu_custom_call.1} parent=1 // pred_check_branch
      %42 = sbr.rel (0) target = $region29
    $region28: #{tpu_custom_call.1} parent=1 // pred_region
      _
    $region29: #{tpu_custom_call.1} parent=1 // pred_fallthru
      _
    // Predicated region
    $region30: #{tpu_custom_call.1} parent=1 // pred_check
      _
    $region31: #{tpu_custom_call.1} parent=1 // pred_check_branch
      %44 = sbr.rel (0) target = $region33
    $region32: #{tpu_custom_call.1} parent=1 // pred_region
      _
    $region33: #{tpu_custom_call.1} parent=1 // pred_fallthru
      _
    // Predicated region
    $region34: #{tpu_custom_call.1} parent=1 // pred_check
      _
    $region35: #{tpu_custom_call.1} parent=1 // pred_check_branch
      %46 = sbr.rel (0) target = $region37
    $region36: #{tpu_custom_call.1} parent=1 // pred_region
      _
    $region37: #{tpu_custom_call.1} parent=1 // pred_fallthru
      _
    // Predicated region
    $region38: #{tpu_custom_call.1} parent=1 // pred_check
      _
    $region39: #{tpu_custom_call.1} parent=1 // pred_check_branch
      %48 = sbr.rel (0) target = $region41
    $region40: #{tpu_custom_call.1} parent=1 // pred_region
      _
    $region41: #{tpu_custom_call.1} parent=1 // pred_fallthru
      _
    // Predicated region
    $region42: #{tpu_custom_call.1} parent=1 // pred_check
      _
    $region43: #{tpu_custom_call.1} parent=1 // pred_check_branch
      %50 = sbr.rel (0) target = $region45
    $region44: #{tpu_custom_call.1} parent=1 // pred_region
      _
    $region45: #{tpu_custom_call.1} parent=1 // pred_fallthru
      _
    // Predicated region
    $region46: #{tpu_custom_call.1} parent=1 // pred_check
      _
    $region47: #{tpu_custom_call.1} parent=1 // pred_check_branch
      %52 = sbr.rel (0) target = $region49
    $region48: #{tpu_custom_call.1} parent=1 // pred_region
      _
    $region49: #{tpu_custom_call.1} parent=1 // pred_fallthru
      _
    // Predicated region
    $region50: #{tpu_custom_call.1} parent=1 // pred_check
      _
    $region51: #{tpu_custom_call.1} parent=1 // pred_check_branch
      %54 = sbr.rel (0) target = $region53
    $region52: #{tpu_custom_call.1} parent=1 // pred_region
      %55 = dma.done [#allocation3], 128
    $region53: #{tpu_custom_call.1} parent=1 // pred_fallthru
      _
    %v57 = vld [vmem:[%s0] sm:$0xff]
    %v58 = vld [vmem:[%s0 + $0x8] sm:$0xff]
    %v59 = vpack.c.bf16 %v58, %v57
    %v60 = vld [vmem:[%s1] sm:$0xff]
    %v61 = vld [vmem:[%s1 + $0x8] sm:$0xff]
    %v62 = vld [vmem:[#allocation2] sm:$0xf]
    %v63 = vld [vmem:[#allocation2 + $0x4] sm:$0xf]
    %v64 = vld [vmem:[%s3] sm:$0x1]
    %v66 = vlaneseq
    %v67 = vshrl.u32 %v66, 7
    %v68 = vsub.s32 0, %v67
    %v69 = vrot.slane %v64, %v68
    %v73 = vunpack.c.l.b16 %v62
    %v74 = vunpack.c.l.b16 %v63
    %v75 = vpack.c.b16 %v74, %v73
    %vm77 = vcmask 130048
    %v79 = vsel %vm77, %v59, 0
    %81 = vmatprep.subr.bf16.mxu0 0
    %82 = vmatpush1.bf16.msra.mxu0 %v75
    %83 = vmatprep.subr.bf16.mxu0 0
    %84 = vmatpush1.bf16.msra.mxu0 0
    %85 = vmatprep.subr.bf16.mxu0 0
    %86 = vmatpush1.bf16.msra.mxu0 0
    %87 = vmatprep.subr.bf16.mxu0 0
    %88 = vmatpush1.bf16.msra.mxu0 0
    %89 = vmatprep.subr.bf16.mxu0 0
    %90 = vmatpush1.bf16.msra.mxu0 0
    %91 = vmatprep.subr.bf16.mxu0 0
    %92 = vmatpush1.bf16.msra.mxu0 0
    %93 = vmatprep.subr.bf16.mxu0 0
    %94 = vmatpush1.bf16.msra.mxu0 0
    %95 = vmatprep.subr.bf16.mxu0 0
    %96 = vmatpush1.bf16.msra.mxu0 0
    %97 = vmatprep.subr.bf16.mxu0 0
    %98 = vmatpush1.bf16.msra.mxu0 0
    %99 = vmatprep.subr.bf16.mxu0 0
    %100 = vmatpush1.bf16.msra.mxu0 0
    %101 = vmatprep.subr.bf16.mxu0 0
    %102 = vmatpush1.bf16.msra.mxu0 0
    %103 = vmatprep.subr.bf16.mxu0 0
    %104 = vmatpush1.bf16.msra.mxu0 0
    %105 = vmatprep.subr.bf16.mxu0 0
    %106 = vmatpush1.bf16.msra.mxu0 0
    %107 = vmatprep.subr.bf16.mxu0 0
    %108 = vmatpush1.bf16.msra.mxu0 0
    %109 = vmatprep.subr.bf16.mxu0 0
    %110 = vmatpush1.bf16.msra.mxu0 0
    %111 = vmatprep.subr.bf16.mxu0 0
    %112 = vmatpush1.bf16.msra.mxu0 0
    %113 = vmatprep.mubr.bf16.mxu0 0
    %114 = vmatmul.mubr.bf16.gmra.mrb[0].mxu0 %v79
    %v115 = vpop.f32.mrb[0].mxu0
    %v116 = vadd.f32 %v69, %v115
    %v117 = vpop.f32.mrb[0].mxu0
    %v118 = vpop.f32.mrb[0].mxu0
    %v119 = vadd.f32 %v69, %v118
    %v120 = vpop.f32.mrb[0].mxu0
    %121 = vdwg.mxu0
    %v122 = vmax.f32 %v116, 0.0
    %v123 = vmax.f32 %v119, 0.0
    %v124 = vpack.c.bf16 %v123, %v122
    %v125 = vld [vmem:[%s4] sm:$0xf]
    %v126 = vld [vmem:[%s4 + $0x4] sm:$0xf]
    %v127 = vld [vmem:[%s4 + $0x8] sm:$0xf]
    %v128 = vld [vmem:[%s4 + $0xc] sm:$0xf]
    %v129 = vld [vmem:[%s4 + $0x10] sm:$0xf]
    %v130 = vld [vmem:[%s4 + $0x14] sm:$0xf]
    %v131 = vld [vmem:[%s4 + $0x18] sm:$0xf]
    %v132 = vld [vmem:[%s4 + $0x1c] sm:$0xf]
    %v133 = vld [vmem:[%s5] sm:$0x1]
    %v135 = vlaneseq
    %v136 = vshrl.u32 %v135, 7
    %v137 = vsub.s32 0, %v136
    %v138 = vrot.slane %v133, %v137
    %v148 = vunpack.c.l.b16 %v125
    %v149 = vunpack.c.l.b16 %v126
    %v150 = vunpack.c.l.b16 %v127
    %v151 = vunpack.c.l.b16 %v128
    %v152 = vunpack.c.l.b16 %v129
    %v153 = vunpack.c.l.b16 %v130
    %v154 = vunpack.c.l.b16 %v131
    %v155 = vunpack.c.l.b16 %v132
    %v156 = vpack.c.b16 %v149, %v148
    %v157 = vpack.c.b16 %v151, %v150
    %v158 = vpack.c.b16 %v153, %v152
    %v159 = vpack.c.b16 %v155, %v154
    %vm164 = vcmask 523264
    %v166 = vsel %vm164, %v124, 0
    %168 = vmatprep.subr.bf16.mxu0 0
    %169 = vmatpush1.bf16.msra.mxu0 %v156
    %170 = vmatprep.subr.bf16.mxu0 0
    %171 = vmatpush1.bf16.msra.mxu0 %v157
    %172 = vmatprep.subr.bf16.mxu0 0
    %173 = vmatpush1.bf16.msra.mxu0 %v158
    %174 = vmatprep.subr.bf16.mxu0 0
    %175 = vmatpush1.bf16.msra.mxu0 %v159
    %176 = vmatprep.subr.bf16.mxu0 0
    %177 = vmatpush1.bf16.msra.mxu0 0
    %178 = vmatprep.subr.bf16.mxu0 0
    %179 = vmatpush1.bf16.msra.mxu0 0
    %180 = vmatprep.subr.bf16.mxu0 0
    %181 = vmatpush1.bf16.msra.mxu0 0
    %182 = vmatprep.subr.bf16.mxu0 0
    %183 = vmatpush1.bf16.msra.mxu0 0
    %184 = vmatprep.subr.bf16.mxu0 0
    %185 = vmatpush1.bf16.msra.mxu0 0
    %186 = vmatprep.subr.bf16.mxu0 0
    %187 = vmatpush1.bf16.msra.mxu0 0
    %188 = vmatprep.subr.bf16.mxu0 0
    %189 = vmatpush1.bf16.msra.mxu0 0
    %190 = vmatprep.subr.bf16.mxu0 0
    %191 = vmatpush1.bf16.msra.mxu0 0
    %192 = vmatprep.subr.bf16.mxu0 0
    %193 = vmatpush1.bf16.msra.mxu0 0
    %194 = vmatprep.subr.bf16.mxu0 0
    %195 = vmatpush1.bf16.msra.mxu0 0
    %196 = vmatprep.subr.bf16.mxu0 0
    %197 = vmatpush1.bf16.msra.mxu0 0
    %198 = vmatprep.subr.bf16.mxu0 0
    %199 = vmatpush1.bf16.msra.mxu0 0
    %200 = vmatprep.mubr.bf16.mxu0 0
    %201 = vmatmul.mubr.bf16.gmra.mrb[0].mxu0 %v166
    %v202 = vpop.f32.mrb[0].mxu0
    %v203 = vadd.f32 %v138, %v202
    %v204 = vpop.f32.mrb[0].mxu0
    %v205 = vpop.f32.mrb[0].mxu0
    %v206 = vadd.f32 %v138, %v205
    %v207 = vpop.f32.mrb[0].mxu0
    %208 = vdwg.mxu0
    %v209 = vmax.f32 %v203, 0.0
    %v210 = vmax.f32 %v206, 0.0
    %v211 = vpack.c.bf16 %v210, %v209
    %v212 = vld [vmem:[%s6] sm:$0xf]
    %v213 = vld [vmem:[%s6 + $0x4] sm:$0xf]
    %v214 = vld [vmem:[%s6 + $0x8] sm:$0xf]
    %v215 = vld [vmem:[%s6 + $0xc] sm:$0xf]
    %v216 = vld [vmem:[%s6 + $0x10] sm:$0xf]
    %v217 = vld [vmem:[%s6 + $0x14] sm:$0xf]
    %v218 = vld [vmem:[%s6 + $0x18] sm:$0xf]
    %v219 = vld [vmem:[%s6 + $0x1c] sm:$0xf]
    %v220 = vld [vmem:[%s6 + $0x20] sm:$0xf]
    %v221 = vld [vmem:[%s6 + $0x24] sm:$0xf]
    %v222 = vld [vmem:[%s6 + $0x28] sm:$0xf]
    %v223 = vld [vmem:[%s6 + $0x2c] sm:$0xf]
    %v224 = vld [vmem:[%s6 + $0x30] sm:$0xf]
    %v225 = vld [vmem:[%s6 + $0x34] sm:$0xf]
    %v226 = vld [vmem:[%s6 + $0x38] sm:$0xf]
    %v227 = vld [vmem:[%s6 + $0x3c] sm:$0xf]
    %v228 = vld [vmem:[%s7] sm:$0x1]
    %v230 = vlaneseq
    %v231 = vshrl.u32 %v230, 7
    %v232 = vsub.s32 0, %v231
    %v233 = vrot.slane %v228, %v232
    %v251 = vunpack.c.l.b16 %v212
    %v252 = vunpack.c.l.b16 %v213
    %v253 = vunpack.c.l.b16 %v214
    %v254 = vunpack.c.l.b16 %v215
    %v255 = vunpack.c.l.b16 %v216
    %v256 = vunpack.c.l.b16 %v217
    %v257 = vunpack.c.l.b16 %v218
    %v258 = vunpack.c.l.b16 %v219
    %v259 = vunpack.c.l.b16 %v220
    %v260 = vunpack.c.l.b16 %v221
    %v261 = vunpack.c.l.b16 %v222
    %v262 = vunpack.c.l.b16 %v223
    %v263 = vunpack.c.l.b16 %v224
    %v264 = vunpack.c.l.b16 %v225
    %v265 = vunpack.c.l.b16 %v226
    %v266 = vunpack.c.l.b16 %v227
    %v267 = vpack.c.b16 %v252, %v251
    %v268 = vpack.c.b16 %v254, %v253
    %v269 = vpack.c.b16 %v256, %v255
    %v270 = vpack.c.b16 %v258, %v257
    %v271 = vpack.c.b16 %v260, %v259
    %v272 = vpack.c.b16 %v262, %v261
    %v273 = vpack.c.b16 %v264, %v263
    %v274 = vpack.c.b16 %v266, %v265
    %283 = vmatprep.subr.bf16.mxu0 0
    %284 = vmatpush1.bf16.msra.mxu0 %v267
    %285 = vmatprep.subr.bf16.mxu0 0
    %286 = vmatpush1.bf16.msra.mxu0 %v268
    %287 = vmatprep.subr.bf16.mxu0 0
    %288 = vmatpush1.bf16.msra.mxu0 %v269
    %289 = vmatprep.subr.bf16.mxu0 0
    %290 = vmatpush1.bf16.msra.mxu0 %v270
    %291 = vmatprep.subr.bf16.mxu0 0
    %292 = vmatpush1.bf16.msra.mxu0 %v271
    %293 = vmatprep.subr.bf16.mxu0 0
    %294 = vmatpush1.bf16.msra.mxu0 %v272
    %295 = vmatprep.subr.bf16.mxu0 0
    %296 = vmatpush1.bf16.msra.mxu0 %v273
    %297 = vmatprep.subr.bf16.mxu0 0
    %298 = vmatpush1.bf16.msra.mxu0 %v274
    %299 = vmatprep.subr.bf16.mxu0 0
    %300 = vmatpush1.bf16.msra.mxu0 0
    %301 = vmatprep.subr.bf16.mxu0 0
    %302 = vmatpush1.bf16.msra.mxu0 0
    %303 = vmatprep.subr.bf16.mxu0 0
    %304 = vmatpush1.bf16.msra.mxu0 0
    %305 = vmatprep.subr.bf16.mxu0 0
    %306 = vmatpush1.bf16.msra.mxu0 0
    %307 = vmatprep.subr.bf16.mxu0 0
    %308 = vmatpush1.bf16.msra.mxu0 0
    %309 = vmatprep.subr.bf16.mxu0 0
    %310 = vmatpush1.bf16.msra.mxu0 0
    %311 = vmatprep.subr.bf16.mxu0 0
    %312 = vmatpush1.bf16.msra.mxu0 0
    %313 = vmatprep.subr.bf16.mxu0 0
    %314 = vmatpush1.bf16.msra.mxu0 0
    %315 = vmatprep.mubr.bf16.mxu0 0
    %316 = vmatmul.mubr.bf16.gmra.mrb[0].mxu0 %v211
    %v317 = vpop.f32.mrb[0].mxu0
    %v318 = vadd.f32 %v233, %v317
    %v319 = vpop.f32.mrb[0].mxu0
    %v320 = vpop.f32.mrb[0].mxu0
    %v321 = vadd.f32 %v233, %v320
    %v322 = vpop.f32.mrb[0].mxu0
    %323 = vdwg.mxu0
    %v324 = vmax.f32 %v318, 0.0
    %v325 = vmax.f32 %v321, 0.0
    %v326 = vpack.c.bf16 %v325, %v324
    %v327 = vld [vmem:[%s8] sm:$0xf]
    %v328 = vld [vmem:[%s8 + $0x4] sm:$0xf]
    %v329 = vld [vmem:[%s8 + $0x8] sm:$0xf]
    %v330 = vld [vmem:[%s8 + $0xc] sm:$0xf]
    %v331 = vld [vmem:[%s8 + $0x10] sm:$0xf]
    %v332 = vld [vmem:[%s8 + $0x14] sm:$0xf]
    %v333 = vld [vmem:[%s8 + $0x18] sm:$0xf]
    %v334 = vld [vmem:[%s8 + $0x1c] sm:$0xf]
    %v335 = vld [vmem:[%s9] sm:$0x1]
    %v337 = vlaneseq
    %v338 = vshrl.u32 %v337, 7
    %v339 = vsub.s32 0, %v338
    %v340 = vrot.slane %v335, %v339
    %v350 = vunpack.c.l.b16 %v327
    %v351 = vunpack.c.l.b16 %v328
    %v352 = vunpack.c.l.b16 %v329
    %v353 = vunpack.c.l.b16 %v330
    %v354 = vunpack.c.l.b16 %v331
    %v355 = vunpack.c.l.b16 %v332
    %v356 = vunpack.c.l.b16 %v333
    %v357 = vunpack.c.l.b16 %v334
    %v358 = vpack.c.b16 %v351, %v350
    %v359 = vpack.c.b16 %v353, %v352
    %v360 = vpack.c.b16 %v355, %v354
    %v361 = vpack.c.b16 %v357, %v356
    %v367 = vsel %vm164, %v326, 0
    %369 = vmatprep.subr.bf16.mxu0 0
    %370 = vmatpush1.bf16.msra.mxu0 %v358
    %371 = vmatprep.subr.bf16.mxu0 0
    %372 = vmatpush1.bf16.msra.mxu0 %v359
    %373 = vmatprep.subr.bf16.mxu0 0
    %374 = vmatpush1.bf16.msra.mxu0 %v360
    %375 = vmatprep.subr.bf16.mxu0 0
    %376 = vmatpush1.bf16.msra.mxu0 %v361
    %377 = vmatprep.subr.bf16.mxu0 0
    %378 = vmatpush1.bf16.msra.mxu0 0
    %379 = vmatprep.subr.bf16.mxu0 0
    %380 = vmatpush1.bf16.msra.mxu0 0
    %381 = vmatprep.subr.bf16.mxu0 0
    %382 = vmatpush1.bf16.msra.mxu0 0
    %383 = vmatprep.subr.bf16.mxu0 0
    %384 = vmatpush1.bf16.msra.mxu0 0
    %385 = vmatprep.subr.bf16.mxu0 0
    %386 = vmatpush1.bf16.msra.mxu0 0
    %387 = vmatprep.subr.bf16.mxu0 0
    %388 = vmatpush1.bf16.msra.mxu0 0
    %389 = vmatprep.subr.bf16.mxu0 0
    %390 = vmatpush1.bf16.msra.mxu0 0
    %391 = vmatprep.subr.bf16.mxu0 0
    %392 = vmatpush1.bf16.msra.mxu0 0
    %393 = vmatprep.subr.bf16.mxu0 0
    %394 = vmatpush1.bf16.msra.mxu0 0
    %395 = vmatprep.subr.bf16.mxu0 0
    %396 = vmatpush1.bf16.msra.mxu0 0
    %397 = vmatprep.subr.bf16.mxu0 0
    %398 = vmatpush1.bf16.msra.mxu0 0
    %399 = vmatprep.subr.bf16.mxu0 0
    %400 = vmatpush1.bf16.msra.mxu0 0
    %401 = vmatprep.mubr.bf16.mxu0 0
    %402 = vmatmul.mubr.bf16.gmra.mrb[0].mxu0 %v367
    %v403 = vpop.f32.mrb[0].mxu0
    %v404 = vadd.f32 %v340, %v403
    %v405 = vpop.f32.mrb[0].mxu0
    %v406 = vpop.f32.mrb[0].mxu0
    %v407 = vadd.f32 %v340, %v406
    %v408 = vpop.f32.mrb[0].mxu0
    %409 = vdwg.mxu0
    %v410 = vpack.c.bf16 %v61, %v60
    %v411 = vld [vmem:[%s10] sm:$0xf]
    %v412 = vld [vmem:[%s10 + $0x4] sm:$0xf]
    %v413 = vld [vmem:[%s11] sm:$0x1]
    %v415 = vlaneseq
    %v416 = vshrl.u32 %v415, 7
    %v417 = vsub.s32 0, %v416
    %v418 = vrot.slane %v413, %v417
    %v422 = vunpack.c.l.b16 %v411
    %v423 = vunpack.c.l.b16 %v412
    %v424 = vpack.c.b16 %v423, %v422
    %v427 = vsel %vm77, %v410, 0
    %429 = vmatprep.subr.bf16.mxu0 0
    %430 = vmatpush1.bf16.msra.mxu0 %v424
    %431 = vmatprep.subr.bf16.mxu0 0
    %432 = vmatpush1.bf16.msra.mxu0 0
    %433 = vmatprep.subr.bf16.mxu0 0
    %434 = vmatpush1.bf16.msra.mxu0 0
    %435 = vmatprep.subr.bf16.mxu0 0
    %436 = vmatpush1.bf16.msra.mxu0 0
    %437 = vmatprep.subr.bf16.mxu0 0
    %438 = vmatpush1.bf16.msra.mxu0 0
    %439 = vmatprep.subr.bf16.mxu0 0
    %440 = vmatpush1.bf16.msra.mxu0 0
    %441 = vmatprep.subr.bf16.mxu0 0
    %442 = vmatpush1.bf16.msra.mxu0 0
    %443 = vmatprep.subr.bf16.mxu0 0
    %444 = vmatpush1.bf16.msra.mxu0 0
    %445 = vmatprep.subr.bf16.mxu0 0
    %446 = vmatpush1.bf16.msra.mxu0 0
    %447 = vmatprep.subr.bf16.mxu0 0
    %448 = vmatpush1.bf16.msra.mxu0 0
    %449 = vmatprep.subr.bf16.mxu0 0
    %450 = vmatpush1.bf16.msra.mxu0 0
    %451 = vmatprep.subr.bf16.mxu0 0
    %452 = vmatpush1.bf16.msra.mxu0 0
    %453 = vmatprep.subr.bf16.mxu0 0
    %454 = vmatpush1.bf16.msra.mxu0 0
    %455 = vmatprep.subr.bf16.mxu0 0
    %456 = vmatpush1.bf16.msra.mxu0 0
    %457 = vmatprep.subr.bf16.mxu0 0
    %458 = vmatpush1.bf16.msra.mxu0 0
    %459 = vmatprep.subr.bf16.mxu0 0
    %460 = vmatpush1.bf16.msra.mxu0 0
    %461 = vmatprep.mubr.bf16.mxu0 0
    %462 = vmatmul.mubr.bf16.gmra.mrb[0].mxu0 %v427
    %v463 = vpop.f32.mrb[0].mxu0
    %v464 = vadd.f32 %v418, %v463
    %v465 = vpop.f32.mrb[0].mxu0
    %v466 = vpop.f32.mrb[0].mxu0
    %v467 = vadd.f32 %v418, %v466
    %v468 = vpop.f32.mrb[0].mxu0
    %469 = vdwg.mxu0
    %v470 = vadd.f32 %v404, %v464
    %v471 = vadd.f32 %v407, %v467
    %v472 = vsub.f32 0.0, %v470
    %v473 = vsub.f32 0.0, %v471
    %v474 = vmul.f32 %v472, 1.442695
    %v475 = vpow.pop %v474
    %v476 = vmul.f32 %v473, 1.442695
    %v477 = vpow.pop %v476
    %v478 = vadd.f32 %v475, 1.0
    %v479 = vadd.f32 %v477, 1.0
    %v480 = vrcp.pop %v478
    %v481 = vrcp.pop %v479
    %484 = vrot.lane.b32.xlu0 %v464, 96
    %v485 = vpop.permute.xlu0 %484
    %486 = vrot.lane.b32.xlu0 %v467, 96
    %v487 = vpop.permute.xlu0 %486
    %v490 = vmul.f32 %v480, %v485
    %v491 = vmul.f32 %v481, %v487
    %494 = vrot.lane.b32.xlu0 %v490, 32
    %v495 = vpop.permute.xlu0 %494
    %496 = vrot.lane.b32.xlu0 %v491, 32
    %v497 = vpop.permute.xlu0 %496
    %v500 = vadd.f32 %v404, %v495
    %v501 = vadd.f32 %v407, %v497
    %v502 = vtanh.pop %v500
    %v503 = vtanh.pop %v501
    %v504 = vsub.f32 1.0, %v480
    %v505 = vsub.f32 1.0, %v481
    %508 = vrot.lane.b32.xlu0 %v502, 112
    %v509 = vpop.permute.xlu0 %508
    %510 = vrot.lane.b32.xlu0 %v503, 112
    %v511 = vpop.permute.xlu0 %510
    %v514 = vmul.f32 %v504, %v509
    %v515 = vmul.f32 %v505, %v511
    %518 = vrot.lane.b32.xlu0 %v60, 16
    %v519 = vpop.permute.xlu0 %518
    %520 = vrot.lane.b32.xlu0 %v61, 16
    %v521 = vpop.permute.xlu0 %520
    %v524 = vmul.f32 %v480, %v519
    %v525 = vmul.f32 %v481, %v521
    %v526 = vadd.f32 %v514, %v524
    %v527 = vadd.f32 %v515, %v525
    %530 = vrot.lane.b32.xlu0 %v526, 112
    %v531 = vpop.permute.xlu0 %530
    %532 = vrot.lane.b32.xlu0 %v527, 112
    %v533 = vpop.permute.xlu0 %532
    %536 = vst.msk [vmem:[#allocation5] sm:$0xff] %vm77, %v531
    %537 = vst.msk [vmem:[#allocation5 + $0x8] sm:$0xff] %vm77, %v533
    // Predicated region
    $region54: #{tpu_custom_call.1} parent=1 // pred_check
      _
    $region55: #{tpu_custom_call.1} parent=1 // pred_check_branch
      %539 = sbr.rel (0) target = $region57
    $region56: #{tpu_custom_call.1} parent=1 // pred_region
      %s541 = ssub.s32 256, 256
      %542 = vsyncadd [#allocation4], %s541
      %s543 = sshll.u32 [#allocation5], 4
      %s544 = int_to_ptr.vmem [resolvable:$true] %s543
      %549 = dma.vmem_to_hbm [thread:$0]  %s544, 256, %s12, [#allocation4], 128, 128, 8
    $region57: #{tpu_custom_call.1} parent=1 // pred_fallthru
      _
    // Predicated region
    $region58: #{tpu_custom_call.1} parent=1 // pred_check
      _
    $region59: #{tpu_custom_call.1} parent=1 // pred_check_branch
      %551 = sbr.rel (0) target = $region61
    $region60: #{tpu_custom_call.1} parent=1 // pred_region
      %552 = dma.done [#allocation4], 256
    $region61: #{tpu_custom_call.1} parent=1 // pred_fallthru
      _
    %553 = vsyncpa [#allocation3], 1
    %554 = vsyncpa [#allocation4], 1

</llo_original>
